<compile_context>
chip_gen: v7x
topology: tpu7x:2x2x1
jax: 0.10.0
libtpu: 0.0.40
codegen_flags: <defaults>
</compile_context>

<pallas_src>
import jax
import jax.numpy as jnp
from jax.experimental import pallas as pl
from jax.experimental.pallas import tpu as pltpu


def _round_up(a, b):
    return (a + b - 1) // b * b


# ----------------------------- pass 1: pooled sum ----------------------------
def _pool_sum_kernel(x_ref, sum_ref):
    # x_ref: (BR, T) tile of the (rows, HW) slab; sum_ref: (BR, 1) accumulator
    # revisited across the HW grid axis.
    @pl.when(pl.program_id(1) == 0)
    def _():
        sum_ref[...] = jnp.zeros_like(sum_ref)

    # Accumulate the spatial sum in f32 regardless of input dtype.
    sum_ref[...] += jnp.sum(x_ref[...].astype(jnp.float32),
                            axis=-1, keepdims=True)


# --------------------------- pass 2: broadcast scale --------------------------
def _scale_kernel(x_ref, s_ref, o_ref):
    # x_ref: (BR, T), s_ref: (BR, 1) per-row (= per (n,c)) sigmoid scale.
    o_ref[...] = (x_ref[...] * s_ref[...]).astype(o_ref.dtype)


def ca_layer_2d(x, w1, b1, w2, b2):
    """x: (N, C, H, W); w1: (Cr, C); b1: (Cr,); w2: (C, Cr); b2: (C,)."""
    N, C, H, W = x.shape
    HW = H * W
    R = N * C
    itemsize = jnp.dtype(x.dtype).itemsize

    # ---- layout: rows = N*C on sublanes, spatial on lanes (lane-dense) ----
    x2 = x.reshape(R, HW)

    # Lane tile: multiple of 128, target 512-1024 wide.
    T = min(1024, _round_up(HW, 128))
    HWp = _round_up(HW, T)
    # Sublane block: multiple of 8; cover all rows when small, else 256.
    R8 = _round_up(R, 8)
    BR = R8 if R8 <= 256 else 256
    Rp = _round_up(R, BR)

    if (Rp, HWp) != (R, HW):
        x2p = jnp.pad(x2, ((0, Rp - R), (0, HWp - HW)))
    else:
        x2p = x2

    grid = (Rp // BR, HWp // T)

    # Explicit VMEM budget: ~2x double-buffered (BR, T) input + output blocks
    # plus headroom, independent of the full C*H*W size.
    block_bytes = BR * T * itemsize
    vmem_bytes = int(min(64 * 1024 * 1024,
                         max(4 * 1024 * 1024, 6 * block_bytes + (1 << 20))))

    # -------------------------- pass 1: pooled sums -------------------------
    pool_cost = pl.CostEstimate(
        flops=Rp * HWp,
        transcendentals=0,
        bytes_accessed=Rp * HWp * itemsize + Rp * 4,
    )
    sums = pl.pallas_call(
        _pool_sum_kernel,
        out_shape=jax.ShapeDtypeStruct((Rp, 1), jnp.float32),
        grid_spec=pltpu.PrefetchScalarGridSpec(
            num_scalar_prefetch=0,
            grid=grid,
            in_specs=[pl.BlockSpec((BR, T), lambda r, t: (r, t))],
            out_specs=pl.BlockSpec((BR, 1), lambda r, t: (r, 0)),
        ),
        compiler_params=pltpu.CompilerParams(
            dimension_semantics=("parallel", "arbitrary"),
            vmem_limit_bytes=vmem_bytes),
        cost_estimate=pool_cost,
    )(x2p)

    # ------------- squeeze-excite math, batched over all N at once ----------
    # (negligible flops; intentionally outside the streaming grid loops)
    pooled = sums[:R, 0].reshape(N, C) * (1.0 / float(HW))          # (N, C)
    h = jnp.maximum(jnp.dot(pooled, w1.T,
                            preferred_element_type=jnp.float32) + b1[None, :],
                    0.0)                                            # (N, Cr)
    s = jax.nn.sigmoid(jnp.dot(h, w2.T,
                               preferred_element_type=jnp.float32)
                       + b2[None, :])                               # (N, C)
    scale = s.reshape(R, 1).astype(jnp.float32)
    if Rp != R:
        scale = jnp.pad(scale, ((0, Rp - R), (0, 0)))

    # ------------------------- pass 2: x * scale ----------------------------
    scale_cost = pl.CostEstimate(
        flops=Rp * HWp,
        transcendentals=0,
        bytes_accessed=2 * Rp * HWp * itemsize + Rp * 4,
    )
    out = pl.pallas_call(
        _scale_kernel,
        out_shape=jax.ShapeDtypeStruct((Rp, HWp), x.dtype),
        grid_spec=pltpu.PrefetchScalarGridSpec(
            num_scalar_prefetch=0,
            grid=grid,
            in_specs=[pl.BlockSpec((BR, T), lambda r, t: (r, t)),
                      pl.BlockSpec((BR, 1), lambda r, t: (r, 0))],
            out_specs=pl.BlockSpec((BR, T), lambda r, t: (r, t)),
        ),
        compiler_params=pltpu.CompilerParams(
            dimension_semantics=("parallel", "parallel"),
            vmem_limit_bytes=vmem_bytes),
        cost_estimate=scale_cost,
    )(x2p, scale)

    if (Rp, HWp) != (R, HW):
        out = out[:R, :HW]
    return out.reshape(N, C, H, W)


def _reference(x, w1, b1, w2, b2):
    # pure-JAX reference of the PyTorch forward
    y = jnp.mean(x, axis=(2, 3), keepdims=True)                      # (N,C,1,1)
    y = jnp.einsum('oc,nchw->nohw', w1, y) + b1[None, :, None, None]
    y = jnp.maximum(y, 0.0)
    y = jnp.einsum('oc,nchw->nohw', w2, y) + b2[None, :, None, None]
    y = jax.nn.sigmoid(y)
    return x * y


if __name__ == "__main__":
    N, C, H, W = 2, 4, 16, 16
    reduction = 4
    Cr = C // reduction

    key = jax.random.PRNGKey(0)
    k_x, k_w1, k_b1, k_w2, k_b2 = jax.random.split(key, 5)

    x = jax.random.normal(k_x, (N, C, H, W), dtype=jnp.float32)
    # 1x1 conv weights squeezed to 2D, as in the PyTorch module
    w1 = jax.random.normal(k_w1, (Cr, C), dtype=jnp.float32) * 0.5
    b1 = jax.random.normal(k_b1, (Cr,), dtype=jnp.float32) * 0.1
    w2 = jax.random.normal(k_w2, (C, Cr), dtype=jnp.float32) * 0.5
    b2 = jax.random.normal(k_b2, (C,), dtype=jnp.float32) * 0.1

    fn = jax.jit(ca_layer_2d)
    out = jax.block_until_ready(fn(x, w1, b1, w2, b2))

    ref = _reference(x, w1, b1, w2, b2)
    assert out.shape == (N, C, H, W)
    assert jnp.allclose(out, ref, atol=1e-5, rtol=1e-5), "mismatch vs reference"

    print("KERNEL_OK")
</pallas_src>

<mosaic_0001>
module attributes {stable_mosaic.version = 11 : i64} {
  func.func @_pool_sum_kernel(%arg0: i32, %arg1: i32, %arg2: memref<8x256xf32, #tpu.memory_space<vmem>>, %arg3: memref<8x1xf32, #tpu.memory_space<vmem>>) attributes {dimension_semantics = [#tpu.dimension_semantics<parallel>, #tpu.dimension_semantics<arbitrary>], iteration_bounds = array<i64: 1, 1>, scalar_prefetch = 0 : i64, scratch_operands = 0 : i64, tpu.core_type = #tpu.core_type<tc>, window_params = [{transform_indices = @transform_0, window_bounds = array<i64: 8, 256>}, {transform_indices = @transform_1, window_bounds = array<i64: 8, 1>}]} {
    %c0_i32 = arith.constant 0 : i32
    %0 = arith.cmpi eq, %arg1, %c0_i32 : i32
    %1 = arith.extui %0 : i1 to i32
    %c0_i32_0 = arith.constant 0 : i32
    %2 = arith.cmpi ne, %1, %c0_i32_0 : i32
    scf.if %2 {
      %cst_6 = arith.constant 0.000000e+00 : f32
      %9 = vector.broadcast %cst_6 : f32 to vector<8x1xf32>
      %c0_7 = arith.constant 0 : index
      %c0_8 = arith.constant 0 : index
      %10 = vector.load %arg3[%c0_7, %c0_8] : memref<8x1xf32, #tpu.memory_space<vmem>>, vector<8x1xf32>
      tpu.vector_store %arg3[%c0_7, %c0_8], %9 {strides = array<i32>} : memref<8x1xf32, #tpu.memory_space<vmem>>, vector<8x1xf32>,
    } else {
    }
    %c0 = arith.constant 0 : index
    %c0_1 = arith.constant 0 : index
    %3 = vector.load %arg3[%c0, %c0_1] : memref<8x1xf32, #tpu.memory_space<vmem>>, vector<8x1xf32>
    %c0_2 = arith.constant 0 : index
    %c0_3 = arith.constant 0 : index
    %4 = vector.load %arg2[%c0_2, %c0_3] : memref<8x256xf32, #tpu.memory_space<vmem>>, vector<8x256xf32>
    %cst = arith.constant dense<0.000000e+00> : vector<8xf32>
    %5 = vector.multi_reduction <add>, %4, %cst [1] : vector<8x256xf32> to vector<8xf32>
    %6 = vector.shape_cast %5 : vector<8xf32> to vector<8x1xf32>
    %7 = arith.addf %3, %6 : vector<8x1xf32>
    %c0_4 = arith.constant 0 : index
    %c0_5 = arith.constant 0 : index
    %8 = vector.load %arg3[%c0_4, %c0_5] : memref<8x1xf32, #tpu.memory_space<vmem>>, vector<8x1xf32>
    tpu.vector_store %arg3[%c0_4, %c0_5], %7 {strides = array<i32>} : memref<8x1xf32, #tpu.memory_space<vmem>>, vector<8x1xf32>,
    return
  }
  func.func @transform_0(%arg0: i32, %arg1: i32) -> (i32, i32) {
    %c0_i32 = arith.constant 0 : i32
    return %arg0, %arg1 : i32, i32
  }
  func.func @transform_1(%arg0: i32, %arg1: i32) -> (i32, i32) {
    %c0_i32 = arith.constant 0 : i32
    %c0_i32_0 = arith.constant 0 : i32
    return %arg0, %c0_i32 : i32, i32
  }
}

module attributes {stable_mosaic.version = 11 : i64} {
  func.func @_scale_kernel(%arg0: i32, %arg1: i32, %arg2: memref<8x256xf32, #tpu.memory_space<vmem>>, %arg3: memref<8x1xf32, #tpu.memory_space<vmem>>, %arg4: memref<8x256xf32, #tpu.memory_space<vmem>>) attributes {dimension_semantics = [#tpu.dimension_semantics<parallel>, #tpu.dimension_semantics<parallel>], iteration_bounds = array<i64: 1, 1>, scalar_prefetch = 0 : i64, scratch_operands = 0 : i64, tpu.core_type = #tpu.core_type<tc>, window_params = [{transform_indices = @transform_0, window_bounds = array<i64: 8, 256>}, {transform_indices = @transform_1, window_bounds = array<i64: 8, 1>}, {transform_indices = @transform_2, window_bounds = array<i64: 8, 256>}]} {
    %c0 = arith.constant 0 : index
    %c0_0 = arith.constant 0 : index
    %0 = vector.load %arg2[%c0, %c0_0] : memref<8x256xf32, #tpu.memory_space<vmem>>, vector<8x256xf32>
    %c0_1 = arith.constant 0 : index
    %c0_2 = arith.constant 0 : index
    %1 = vector.load %arg3[%c0_1, %c0_2] : memref<8x1xf32, #tpu.memory_space<vmem>>, vector<8x1xf32>
    %2 = vector.broadcast %1 : vector<8x1xf32> to vector<8x256xf32>
    %3 = arith.mulf %0, %2 : vector<8x256xf32>
    %c0_3 = arith.constant 0 : index
    %c0_4 = arith.constant 0 : index
    %4 = vector.load %arg4[%c0_3, %c0_4] : memref<8x256xf32, #tpu.memory_space<vmem>>, vector<8x256xf32>
    tpu.vector_store %arg4[%c0_3, %c0_4], %3 {strides = array<i32>} : memref<8x256xf32, #tpu.memory_space<vmem>>, vector<8x256xf32>,
    return
  }
  func.func @transform_0(%arg0: i32, %arg1: i32) -> (i32, i32) {
    %c0_i32 = arith.constant 0 : i32
    return %arg0, %arg1 : i32, i32
  }
  func.func @transform_1(%arg0: i32, %arg1: i32) -> (i32, i32) {
    %c0_i32 = arith.constant 0 : i32
    %c0_i32_0 = arith.constant 0 : i32
    return %arg0, %c0_i32 : i32, i32
  }
  func.func @transform_2(%arg0: i32, %arg1: i32) -> (i32, i32) {
    %c0_i32 = arith.constant 0 : i32
    return %arg0, %arg1 : i32, i32
  }
}

</mosaic_0001>

<llo_original>
// kernel: ca_layer_2d.2
$region0: #{ca_layer_2d.2}
  #allocation0 [shape = 'u32[]', space=smem, size = 0x4, offset = 0x4, fixed_abs, tag = 'smem constant byte address 0x4 - core index']
  #allocation1 [shape = 'u32[144,128]{1,0:T(1,128)}', space=vmem, size = 0x12000, scoped, tag = 'internal scratch']
  %s0 = inlined_call_operand.vmem [shape: f32[8,256], index: 0, kind: input, shape index: {}]
  %s1 = inlined_call_operand.vmem [shape: f32[8,1], index: 1, kind: output, shape index: {}]
  %s2 = sld [smem:[#allocation0]]
  $region18: #{ca_layer_2d.2} parent=0
    _
  %s4 = ssub.s32 1, %s2
  %s5 = scalar_select 0, %s4, %s2
  // Predicated region
  $region2: #{ca_layer_2d.2} parent=0 // pred_check
    _
  $region3: #{ca_layer_2d.2} parent=0 // pred_check_branch
    %7 = sbr.rel (0) target = $region5
  $region4: #{ca_layer_2d.2} parent=0 // pred_region
    _
  $region5: #{ca_layer_2d.2} parent=0 // pred_fallthru
    _
  %p8 = scmp.eq.s32.totalorder 0, 0
  // Predicated region
  $region6: #{ca_layer_2d.2} parent=0 // pred_check
    %p9 = pneg %p8
  $region7: #{ca_layer_2d.2} parent=0 // pred_check_branch
    %11 = sbr.rel (%p9) target = $region9
  $region8: #{ca_layer_2d.2} parent=0 // pred_region
    %vm12 = vcmask 7168
    %13 = vst.msk [vmem:[%s1] sm:$0xff] %vm12, 0.0
  $region9: #{ca_layer_2d.2} parent=0 // pred_fallthru
    _
  %v14 = vld [vmem:[%s1] sm:$0xff]
  %v15 = vld [vmem:[%s0] sm:$0xff]
  %v16 = vld [vmem:[%s0 + $0x8] sm:$0xff]
  %v17 = vadd.f32 %v15, %v16
  %18 = vadd.xlane.f32.xlu0 %v17
  %v19 = vpop.xlane.xlu0 %18
  %v20 = vadd.f32 %v14, %v19
  %vm21 = vcmask 7168
  %22 = vst.msk [vmem:[%s1] sm:$0xff] %vm21, %v20
  // Predicated region
  $region10: #{ca_layer_2d.2} parent=0 // pred_check
    _
  $region11: #{ca_layer_2d.2} parent=0 // pred_check_branch
    %24 = sbr.rel (0) target = $region13
  $region12: #{ca_layer_2d.2} parent=0 // pred_region
    _
  $region13: #{ca_layer_2d.2} parent=0 // pred_fallthru
    _
  // Predicated region
  $region14: #{ca_layer_2d.2} parent=0 // pred_check
    _
  $region15: #{ca_layer_2d.2} parent=0 // pred_check_branch
    %26 = sbr.rel (0) target = $region17
  $region16: #{ca_layer_2d.2} parent=0 // pred_region
    _
  $region17: #{ca_layer_2d.2} parent=0 // pred_fallthru
    _

// kernel: ca_layer_2d.3
$region0: #{ca_layer_2d.3}
  #allocation0 [shape = 'u32[]', space=smem, size = 0x4, offset = 0x4, fixed_abs, tag = 'smem constant byte address 0x4 - core index']
  #allocation1 [shape = 'u32[144,128]{1,0:T(1,128)}', space=vmem, size = 0x12000, scoped, tag = 'internal scratch']
  %s0 = inlined_call_operand.vmem [shape: f32[8,256], index: 0, kind: input, shape index: {}]
  %s1 = inlined_call_operand.vmem [shape: f32[8,1], index: 1, kind: input, shape index: {}]
  %s2 = inlined_call_operand.vmem [shape: f32[8,256], index: 2, kind: output, shape index: {}]
  %s3 = sld [smem:[#allocation0]]
  $region18: #{ca_layer_2d.3} parent=0
    _
  %s5 = ssub.s32 1, %s3
  %s6 = scalar_select 0, %s5, %s3
  // Predicated region
  $region2: #{ca_layer_2d.3} parent=0 // pred_check
    _
  $region3: #{ca_layer_2d.3} parent=0 // pred_check_branch
    %8 = sbr.rel (0) target = $region5
  $region4: #{ca_layer_2d.3} parent=0 // pred_region
    _
  $region5: #{ca_layer_2d.3} parent=0 // pred_fallthru
    _
  // Predicated region
  $region6: #{ca_layer_2d.3} parent=0 // pred_check
    _
  $region7: #{ca_layer_2d.3} parent=0 // pred_check_branch
    %10 = sbr.rel (0) target = $region9
  $region8: #{ca_layer_2d.3} parent=0 // pred_region
    _
  $region9: #{ca_layer_2d.3} parent=0 // pred_fallthru
    _
  %v11 = vld [vmem:[%s0] sm:$0xff]
  %v12 = vld [vmem:[%s0 + $0x8] sm:$0xff]
  %v13 = vld [vmem:[%s1] sm:$0xff]
  %15 = vset.pattern.permute.xlu0 0
  %16 = vperm.xlu0 %15, %v13
  %v17 = vpop.permute.xlu0 %16
  %v19 = vmul.f32 %v11, %v17
  %v20 = vmul.f32 %v12, %v17
  %21 = vst [vmem:[%s2] sm:$0xff] %v19
  %22 = vst [vmem:[%s2 + $0x8] sm:$0xff] %v20
  // Predicated region
  $region10: #{ca_layer_2d.3} parent=0 // pred_check
    _
  $region11: #{ca_layer_2d.3} parent=0 // pred_check_branch
    %24 = sbr.rel (0) target = $region13
  $region12: #{ca_layer_2d.3} parent=0 // pred_region
    _
  $region13: #{ca_layer_2d.3} parent=0 // pred_fallthru
    _
  // Predicated region
  $region14: #{ca_layer_2d.3} parent=0 // pred_check
    _
  $region15: #{ca_layer_2d.3} parent=0 // pred_check_branch
    %26 = sbr.rel (0) target = $region17
  $region16: #{ca_layer_2d.3} parent=0 // pred_region
    _
  $region17: #{ca_layer_2d.3} parent=0 // pred_fallthru
    _

</llo_original>
